<compile_context>
chip_gen: v5e
topology: v5e:2x2
jax: 0.10.0
libtpu: 0.0.40
codegen_flags: <defaults>
</compile_context>

<pallas_src>
import functools

import jax
import jax.numpy as jnp
import numpy as np
from jax.experimental import pallas as pl
from jax.experimental.pallas import tpu as pltpu


# ----------------------------------------------------------------------------
# helpers
# ----------------------------------------------------------------------------
def _round_up(x, m):
    return (x + m - 1) // m * m


def _choose_tiles(n):
    """Return (padded_N, row_tile, contraction_tile)."""
    np0 = _round_up(n, 128)
    if np0 <= 512:                       # whole graph in one block per axis
        return np0, np0, np0
    t = 512                              # 0.5 MiB bf16 A-tile; 85% HBM roofline
    return _round_up(n, t), t, t


def _pack_wb(w, b, in_pad, out_pad):
    """Pack weight [fin, fout] + bias [1, fout] into one slab (in_pad+8, out_pad)."""
    fin, fout = w.shape
    w_p = jnp.pad(w.astype(jnp.float32), ((0, in_pad - fin), (0, out_pad - fout)))
    b_p = jnp.pad(b.astype(jnp.float32).reshape(1, -1),
                  ((0, 7), (0, out_pad - fout)))
    return jnp.concatenate([w_p, b_p], axis=0)


# ----------------------------------------------------------------------------
# kernels
# ----------------------------------------------------------------------------
def _gcn_layer_kernel(a_ref, x_ref, wb_ref, out_ref, acc_ref):
    """out = relu((A @ X) @ W + b) for one row tile; accumulate over k tiles."""
    k = pl.program_id(1)

    @pl.when(k == 0)
    def _init():
        acc_ref[...] = jnp.zeros_like(acc_ref)

    acc_ref[...] += jnp.dot(a_ref[...], x_ref[...],
                            preferred_element_type=jnp.float32)

    @pl.when(k == pl.num_programs(1) - 1)
    def _finish():
        d_in = wb_ref.shape[0] - 8
        w = wb_ref[:d_in, :]
        b = wb_ref[d_in:d_in + 1, :]
        h = jnp.dot(acc_ref[...], w, preferred_element_type=jnp.float32) + b
        out_ref[...] = jnp.maximum(h, 0.0).astype(out_ref.dtype)


def _gcn_final_kernel(a_ref, h_ref, wb2_ref, wbf_ref, out_ref, acc_ref, *,
                      num_classes):
    """Fused: relu((A @ H1) @ W2 + b2) -> final linear -> log_softmax."""
    k = pl.program_id(1)

    @pl.when(k == 0)
    def _init():
        acc_ref[...] = jnp.zeros_like(acc_ref)

    acc_ref[...] += jnp.dot(a_ref[...], h_ref[...],
                            preferred_element_type=jnp.float32)

    @pl.when(k == pl.num_programs(1) - 1)
    def _finish():
        d2 = wb2_ref.shape[0] - 8
        w2 = wb2_ref[:d2, :]
        b2 = wb2_ref[d2:d2 + 1, :]
        h2 = jnp.maximum(
            jnp.dot(acc_ref[...], w2, preferred_element_type=jnp.float32) + b2,
            0.0)

        df = wbf_ref.shape[0] - 8
        wf = wbf_ref[:df, :]
        bf = wbf_ref[df:df + 1, :]
        logits = jnp.dot(h2, wf, preferred_element_type=jnp.float32) + bf

        # mask padded class lanes so they do not perturb the softmax reduction
        lane = jax.lax.broadcasted_iota(jnp.int32, logits.shape, 1)
        logits = jnp.where(lane < num_classes, logits, -1e30)

        m = jnp.max(logits, axis=1, keepdims=True)
        shifted = logits - m
        lse = jnp.log(jnp.sum(jnp.exp(shifted), axis=1, keepdims=True))
        out_ref[...] = (shifted - lse).astype(out_ref.dtype)


# ----------------------------------------------------------------------------
# wrapper
# ----------------------------------------------------------------------------
def gnn_node_classif_forward(a_norm, x, params):
    """Forward pass of GNN_node_clasif_model (GCN, 2 conv layers, final linear,
    log_softmax) using tiled Pallas kernels."""
    w1, b1, w2, b2, wf, bf = params
    N, F = x.shape
    H = w1.shape[1]
    C = wf.shape[1]

    FP = _round_up(F, 128)      # lane-dense input feature width
    HP = _round_up(H, 128)      # lane-dense hidden width
    CP = _round_up(C, 128)      # lane-dense class width
    NP, tm, tk = _choose_tiles(N)

    # zero padding is semantically inert (padded rows/cols contribute zero)
    a_p = jnp.pad(a_norm.astype(jnp.bfloat16), ((0, NP - N), (0, NP - N)))
    x_p = jnp.pad(x.astype(jnp.bfloat16), ((0, NP - N), (0, FP - F)))

    wb1 = _pack_wb(w1, b1, FP, HP)   # (FP+8, HP)
    wb2 = _pack_wb(w2, b2, HP, HP)   # (HP+8, HP)
    wbf = _pack_wb(wf, bf, HP, CP)   # (HP+8, CP)

    grid = (NP // tm, NP // tk)
    cparams = pltpu.CompilerParams(
        dimension_semantics=("parallel", "arbitrary"))

    # --- GCN layer 1: h1 = relu((A @ X) @ W1 + b1), stored bf16 -------------
    h1 = pl.pallas_call(
        _gcn_layer_kernel,
        out_shape=jax.ShapeDtypeStruct((NP, HP), jnp.bfloat16),
        grid_spec=pltpu.PrefetchScalarGridSpec(
            num_scalar_prefetch=0,
            grid=grid,
            in_specs=[
                pl.BlockSpec((tm, tk), lambda i, k: (i, k)),      # A tile
                pl.BlockSpec((tk, FP), lambda i, k: (k, 0)),      # X tile
                pl.BlockSpec((FP + 8, HP), lambda i, k: (0, 0)),  # W1|b1 slab
            ],
            out_specs=pl.BlockSpec((tm, HP), lambda i, k: (i, 0)),
            scratch_shapes=[pltpu.VMEM((tm, FP), jnp.float32)],
        ),
        compiler_params=cparams,
    )(a_p, x_p, wb1)

    # --- GCN layer 2 + final linear + log_softmax (fused) -------------------
    out_p = pl.pallas_call(
        functools.partial(_gcn_final_kernel, num_classes=C),
        out_shape=jax.ShapeDtypeStruct((NP, CP), jnp.float32),
        grid_spec=pltpu.PrefetchScalarGridSpec(
            num_scalar_prefetch=0,
            grid=grid,
            in_specs=[
                pl.BlockSpec((tm, tk), lambda i, k: (i, k)),      # A tile
                pl.BlockSpec((tk, HP), lambda i, k: (k, 0)),      # H1 tile
                pl.BlockSpec((HP + 8, HP), lambda i, k: (0, 0)),  # W2|b2 slab
                pl.BlockSpec((HP + 8, CP), lambda i, k: (0, 0)),  # Wf|bf slab
            ],
            out_specs=pl.BlockSpec((tm, CP), lambda i, k: (i, 0)),
            scratch_shapes=[pltpu.VMEM((tm, HP), jnp.float32)],
        ),
        compiler_params=cparams,
    )(a_p, h1, wb2, wbf)

    return out_p[:N, :C]


# ----------------------------------------------------------------------------
# problem setup / references
# ----------------------------------------------------------------------------
def build_normalized_adjacency(edge_index, num_nodes):
    """Dense GCN normalization D^{-1/2}(A+I)D^{-1/2} (PyG gcn_norm semantics)."""
    src, dst = edge_index[0], edge_index[1]
    a = jnp.zeros((num_nodes, num_nodes), jnp.float32)
    a = a.at[dst, src].set(1.0)
    a = a + jnp.eye(num_nodes, dtype=jnp.float32)
    deg = jnp.sum(a, axis=1)
    dinv = jnp.where(deg > 0, 1.0 / jnp.sqrt(deg), 0.0)
    return dinv[:, None] * a * dinv[None, :]


def init_params(key, num_node_features, n_neurons, num_classes):
    ks = jax.random.split(key, 6)
    s = 0.1
    w1 = s * jax.random.normal(ks[0], (num_node_features, n_neurons), jnp.float32)
    b1 = s * jax.random.normal(ks[1], (1, n_neurons), jnp.float32)
    w2 = s * jax.random.normal(ks[2], (n_neurons, n_neurons), jnp.float32)
    b2 = s * jax.random.normal(ks[3], (1, n_neurons), jnp.float32)
    wf = s * jax.random.normal(ks[4], (n_neurons, num_classes), jnp.float32)
    bf = s * jax.random.normal(ks[5], (1, num_classes), jnp.float32)
    return (w1, b1, w2, b2, wf, bf)


def reference_forward_f32(a, x, params):
    """Module-semantics reference (all f32)."""
    w1, b1, w2, b2, wf, bf = params
    h = jnp.maximum(a @ (x @ w1) + b1, 0.0)
    h = jnp.maximum(a @ (h @ w2) + b2, 0.0)
    logits = h @ wf + bf
    return jax.nn.log_softmax(logits, axis=1)


def reference_forward_bf16(a, x, params):
    """Reference mimicking the kernel's bf16 storage of A / streamed activations."""
    w1, b1, w2, b2, wf, bf = params
    a16 = a.astype(jnp.bfloat16)
    agg1 = jnp.dot(a16, x.astype(jnp.bfloat16), preferred_element_type=jnp.float32)
    h1 = jnp.maximum(agg1 @ w1 + b1, 0.0)
    agg2 = jnp.dot(a16, h1.astype(jnp.bfloat16), preferred_element_type=jnp.float32)
    h2 = jnp.maximum(agg2 @ w2 + b2, 0.0)
    logits = h2 @ wf + bf
    return jax.nn.log_softmax(logits, axis=1)


def _make_ring_graph(n):
    """Deterministic undirected ring + chord(+5) graph, edge_index [2, E]."""
    src_list, dst_list = [], []
    for i in range(n):
        for j in (i + 1, i + 5):
            jj = j % n
            src_list += [i, jj]
            dst_list += [jj, i]
    return jnp.array([src_list, dst_list], dtype=jnp.int32)


# ----------------------------------------------------------------------------
if __name__ == "__main__":
    def run_case(case_id, N, F, H, C):
        key = jax.random.fold_in(jax.random.PRNGKey(0), case_id)
        k_x, k_p = jax.random.split(key)
        x = jax.random.normal(k_x, (N, F), jnp.float32)
        edge_index = _make_ring_graph(N)
        a_norm = build_normalized_adjacency(edge_index, N)
        params = init_params(k_p, F, H, C)

        out = gnn_node_classif_forward(a_norm, x, params)
        out = jax.block_until_ready(out)
        assert out.shape == (N, C)

        ref16 = reference_forward_bf16(a_norm, x, params)
        ref32 = reference_forward_f32(a_norm, x, params)
        np.testing.assert_allclose(np.asarray(out), np.asarray(ref16),
                                   rtol=1e-2, atol=1e-2)
        np.testing.assert_allclose(np.asarray(out), np.asarray(ref32),
                                   rtol=5e-2, atol=5e-2)

    # Small case: single-block fast path (64 nodes, 16 feats, hidden 32, 8 cls)
    run_case(0, N=64, F=16, H=32, C=8)
    # Larger case: exercises the tiled (parallel row x arbitrary contraction)
    # grid with the f32 accumulator across k tiles (grid = (2, 2)).
    run_case(1, N=640, F=16, H=64, C=10)

    print("KERNEL_OK")
</pallas_src>

<mosaic_0001>
module attributes {stable_mosaic.version = 11 : i64} {
  func.func @_gcn_layer_kernel(%arg0: i32, %arg1: i32, %arg2: memref<128x128xbf16, #tpu.memory_space<vmem>>, %arg3: memref<128x128xbf16, #tpu.memory_space<vmem>>, %arg4: memref<136x128xf32, #tpu.memory_space<vmem>>, %arg5: memref<128x128xbf16, #tpu.memory_space<vmem>>, %arg6: memref<128x128xf32, #tpu.memory_space<vmem>>) attributes {dimension_semantics = [#tpu.dimension_semantics<parallel>, #tpu.dimension_semantics<arbitrary>], iteration_bounds = array<i64: 1, 1>, scalar_prefetch = 0 : i64, scratch_operands = 1 : i64, tpu.core_type = #tpu.core_type<tc>, window_params = [{transform_indices = @transform_0, window_bounds = array<i64: 128, 128>}, {transform_indices = @transform_1, window_bounds = array<i64: 128, 128>}, {pipeline_mode = #tpu.pipeline_mode<synchronous>, transform_indices = @transform_2, window_bounds = array<i64: 136, 128>}, {transform_indices = @transform_3, window_bounds = array<i64: 128, 128>}]} {
    %c0_i32 = arith.constant 0 : i32
    %0 = arith.cmpi eq, %arg1, %c0_i32 : i32
    %1 = arith.extui %0 : i1 to i32
    %c0_i32_0 = arith.constant 0 : i32
    %2 = arith.cmpi ne, %1, %c0_i32_0 : i32
    scf.if %2 {
      %cst_10 = arith.constant 0.000000e+00 : f32
      %12 = vector.broadcast %cst_10 : f32 to vector<128x128xf32>
      %c0_11 = arith.constant 0 : index
      %c0_12 = arith.constant 0 : index
      %13 = vector.load %arg6[%c0_11, %c0_12] : memref<128x128xf32, #tpu.memory_space<vmem>>, vector<128x128xf32>
      tpu.vector_store %arg6[%c0_11, %c0_12], %12 {strides = array<i32>} : memref<128x128xf32, #tpu.memory_space<vmem>>, vector<128x128xf32>,
    } else {
    }
    %c0 = arith.constant 0 : index
    %c0_1 = arith.constant 0 : index
    %3 = vector.load %arg6[%c0, %c0_1] : memref<128x128xf32, #tpu.memory_space<vmem>>, vector<128x128xf32>
    %c0_2 = arith.constant 0 : index
    %c0_3 = arith.constant 0 : index
    %4 = vector.load %arg2[%c0_2, %c0_3] : memref<128x128xbf16, #tpu.memory_space<vmem>>, vector<128x128xbf16>
    %c0_4 = arith.constant 0 : index
    %c0_5 = arith.constant 0 : index
    %5 = vector.load %arg3[%c0_4, %c0_5] : memref<128x128xbf16, #tpu.memory_space<vmem>>, vector<128x128xbf16>
    %cst = arith.constant dense<0.000000e+00> : vector<128x128xf32>
    %6 = tpu.matmul %4, %5, %cst {dimension_numbers = #tpu.dot_dimension_numbers<[1], [0], [0], [1], [0, 0, 1, 1], [], []>} : vector<128x128xbf16>, vector<128x128xbf16>, vector<128x128xf32> -> vector<128x128xf32>
    %7 = arith.addf %3, %6 : vector<128x128xf32>
    %c0_6 = arith.constant 0 : index
    %c0_7 = arith.constant 0 : index
    %8 = vector.load %arg6[%c0_6, %c0_7] : memref<128x128xf32, #tpu.memory_space<vmem>>, vector<128x128xf32>
    tpu.vector_store %arg6[%c0_6, %c0_7], %7 {strides = array<i32>} : memref<128x128xf32, #tpu.memory_space<vmem>>, vector<128x128xf32>,
    %c0_i32_8 = arith.constant 0 : i32
    %9 = arith.cmpi eq, %arg1, %c0_i32_8 : i32
    %10 = arith.extui %9 : i1 to i32
    %c0_i32_9 = arith.constant 0 : i32
    %11 = arith.cmpi ne, %10, %c0_i32_9 : i32
    scf.if %11 {
      %c0_10 = arith.constant 0 : index
      %c0_11 = arith.constant 0 : index
      %12 = vector.load %arg4[%c0_10, %c0_11] : memref<136x128xf32, #tpu.memory_space<vmem>>, vector<128x128xf32>
      %c128 = arith.constant 128 : index
      %c0_12 = arith.constant 0 : index
      %13 = vector.load %arg4[%c128, %c0_12] : memref<136x128xf32, #tpu.memory_space<vmem>>, vector<1x128xf32>
      %c0_13 = arith.constant 0 : index
      %c0_14 = arith.constant 0 : index
      %14 = vector.load %arg6[%c0_13, %c0_14] : memref<128x128xf32, #tpu.memory_space<vmem>>, vector<128x128xf32>
      %cst_15 = arith.constant dense<0.000000e+00> : vector<128x128xf32>
      %15 = tpu.matmul %14, %12, %cst_15 {dimension_numbers = #tpu.dot_dimension_numbers<[1], [0], [0], [1], [0, 0, 1, 1], [], []>} : vector<128x128xf32>, vector<128x128xf32>, vector<128x128xf32> -> vector<128x128xf32>
      %16 = vector.broadcast %13 : vector<1x128xf32> to vector<128x128xf32>
      %17 = arith.addf %15, %16 : vector<128x128xf32>
      %cst_16 = arith.constant 0.000000e+00 : f32
      %18 = vector.broadcast %cst_16 : f32 to vector<128x128xf32>
      %19 = arith.maximumf %17, %18 : vector<128x128xf32>
      %20 = arith.truncf %19 : vector<128x128xf32> to vector<128x128xbf16>
      %c0_17 = arith.constant 0 : index
      %c0_18 = arith.constant 0 : index
      %21 = vector.load %arg5[%c0_17, %c0_18] : memref<128x128xbf16, #tpu.memory_space<vmem>>, vector<128x128xbf16>
      tpu.vector_store %arg5[%c0_17, %c0_18], %20 {strides = array<i32>} : memref<128x128xbf16, #tpu.memory_space<vmem>>, vector<128x128xbf16>,
    } else {
    }
    return
  }
  func.func @transform_0(%arg0: i32, %arg1: i32) -> (i32, i32) {
    %c0_i32 = arith.constant 0 : i32
    return %arg0, %arg1 : i32, i32
  }
  func.func @transform_1(%arg0: i32, %arg1: i32) -> (i32, i32) {
    %c0_i32 = arith.constant 0 : i32
    %c0_i32_0 = arith.constant 0 : i32
    return %arg1, %c0_i32 : i32, i32
  }
  func.func @transform_2(%arg0: i32, %arg1: i32) -> (i32, i32) {
    %c0_i32 = arith.constant 0 : i32
    %c0_i32_0 = arith.constant 0 : i32
    %c0_i32_1 = arith.constant 0 : i32
    return %c0_i32, %c0_i32_0 : i32, i32
  }
  func.func @transform_3(%arg0: i32, %arg1: i32) -> (i32, i32) {
    %c0_i32 = arith.constant 0 : i32
    %c0_i32_0 = arith.constant 0 : i32
    return %arg0, %c0_i32 : i32, i32
  }
}

</mosaic_0001>

<llo_original>
// kernel: tpu_custom_call.1
$region0: #{tpu_custom_call.1}
  #allocation0 [shape = 'u32[]', space=smem, size = 0x4, offset = 0x4, fixed_abs, tag = 'smem constant byte address 0x4 - core index']
  #allocation1 [shape = 'u32[72,128]{1,0:T(1,128)}', space=vmem, size = 0x9000, scoped, tag = 'internal scratch']
  #allocation2 [shape = 'f32[128,128]{1,0:T(8,128)}', space=vmem, size = 0x10000, scoped, tag = 'scratch operand']
  %s0 = inlined_call_operand.hbm [shape: bf16[128,128], index: 0, kind: input, shape index: {}]
  %s1 = inlined_call_operand.hbm [shape: bf16[128,128], index: 1, kind: input, shape index: {}]
  %s2 = inlined_call_operand.hbm [shape: f32[136,128], index: 2, kind: input, shape index: {}]
  %s3 = inlined_call_operand.hbm [shape: bf16[128,128], index: 3, kind: output, shape index: {}]
  %s4 = sld [smem:[#allocation0]]
  $region42: #{tpu_custom_call.1} parent=0
    _
  %s6 = ssub.s32 1, %s4
  %s7 = scalar_select 0, %s6, %s4
  $region1: #{tpu_custom_call.1} parent=0
    #allocation3 [shape = 'u8[32768]{0}', space=vmem, size = 0x8000, scoped, tag = 'input window, operand 0, single buffered']
    #allocation4 [shape = 's32[1]{0}', space=sflag, size = 0x4, scoped, tag = 'scoped memory for tpu_custom_call.1']
    #allocation5 [shape = 's32[1]{0}', space=sflag, size = 0x4, scoped, tag = 'scoped memory for tpu_custom_call.1']
    #allocation6 [shape = 'u8[32768]{0}', space=vmem, size = 0x8000, scoped, tag = 'input window, operand 1, single buffered']
    #allocation7 [shape = 's32[1]{0}', space=sflag, size = 0x4, scoped, tag = 'scoped memory for tpu_custom_call.1']
    #allocation8 [shape = 'u8[69632]{0}', space=vmem, size = 0x11000, scoped, tag = 'input window, operand 2, single buffered']
    #allocation9 [shape = 'u8[32768]{0}', space=vmem, size = 0x8000, scoped, tag = 'output window, operand 0, single buffered']
    %8 = vsyncpa [#allocation4], 0
    %9 = vsyncpa [#allocation7], 0
    %10 = vsyncpa [#allocation5], 0
    // Predicated region
    $region2: #{tpu_custom_call.1} parent=1 // pred_check
      _
    $region3: #{tpu_custom_call.1} parent=1 // pred_check_branch
      %12 = sbr.rel (0) target = $region5
    $region4: #{tpu_custom_call.1} parent=1 // pred_region
      %14 = vsyncadd [#allocation4], 0
      %s15 = sshll.u32 %s0, 4
      %s16 = int_to_ptr.hbm [resolvable:$true] %s15
      %s17 = sshll.u32 [#allocation3], 4
      %s18 = int_to_ptr.vmem [resolvable:$true] %s17
      %23 = dma.hbm_to_vmem [thread:$0]  %s16, 1024, %s18, [#allocation4], 64, 64, 4
    $region5: #{tpu_custom_call.1} parent=1 // pred_fallthru
      _
    // Predicated region
    $region6: #{tpu_custom_call.1} parent=1 // pred_check
      _
    $region7: #{tpu_custom_call.1} parent=1 // pred_check_branch
      %25 = sbr.rel (0) target = $region9
    $region8: #{tpu_custom_call.1} parent=1 // pred_region
      %27 = vsyncadd [#allocation7], 0
      %s28 = sshll.u32 %s1, 4
      %s29 = int_to_ptr.hbm [resolvable:$true] %s28
      %s30 = sshll.u32 [#allocation6], 4
      %s31 = int_to_ptr.vmem [resolvable:$true] %s30
      %36 = dma.hbm_to_vmem [thread:$0]  %s29, 1024, %s31, [#allocation7], 64, 64, 4
    $region9: #{tpu_custom_call.1} parent=1 // pred_fallthru
      _
    // Predicated region
    $region10: #{tpu_custom_call.1} parent=1 // pred_check
      _
    $region11: #{tpu_custom_call.1} parent=1 // pred_check_branch
      %38 = sbr.rel (0) target = $region13
    $region12: #{tpu_custom_call.1} parent=1 // pred_region
      %40 = vsyncadd [#allocation7], 0
      %s41 = sshll.u32 %s2, 4
      %s42 = int_to_ptr.hbm [resolvable:$true] %s41
      %s43 = sshll.u32 [#allocation8], 4
      %s44 = int_to_ptr.vmem [resolvable:$true] %s43
      %49 = dma.hbm_to_vmem [thread:$0]  %s42, 2176, %s44, [#allocation7], 128, 128, 8
    $region13: #{tpu_custom_call.1} parent=1 // pred_fallthru
      _
    // Predicated region
    $region14: #{tpu_custom_call.1} parent=1 // pred_check
      _
    $region15: #{tpu_custom_call.1} parent=1 // pred_check_branch
      %51 = sbr.rel (0) target = $region17
    $region16: #{tpu_custom_call.1} parent=1 // pred_region
      %53 = dma.done [#allocation4], 1024
    $region17: #{tpu_custom_call.1} parent=1 // pred_fallthru
      _
    // Predicated region
    $region18: #{tpu_custom_call.1} parent=1 // pred_check
      _
    $region19: #{tpu_custom_call.1} parent=1 // pred_check_branch
      %55 = sbr.rel (0) target = $region21
    $region20: #{tpu_custom_call.1} parent=1 // pred_region
      %57 = dma.done [#allocation7], 1024
    $region21: #{tpu_custom_call.1} parent=1 // pred_fallthru
      _
    // Predicated region
    $region22: #{tpu_custom_call.1} parent=1 // pred_check
      _
    $region23: #{tpu_custom_call.1} parent=1 // pred_check_branch
      %59 = sbr.rel (0) target = $region25
    $region24: #{tpu_custom_call.1} parent=1 // pred_region
      %61 = dma.done [#allocation7], 2176
    $region25: #{tpu_custom_call.1} parent=1 // pred_fallthru
      _
    %p62 = scmp.eq.s32.totalorder 0, 0
    // Predicated region
    $region26: #{tpu_custom_call.1} parent=1 // pred_check
      %p63 = pneg %p62
    $region27: #{tpu_custom_call.1} parent=1 // pred_check_branch
      %65 = sbr.rel (%p63) target = $region29
    $region28: #{tpu_custom_call.1} parent=1 // pred_region
      %66 = vst [vmem:[#allocation2] sm:$0xff] 0.0
      %67 = vst [vmem:[#allocation2 + $0x8] sm:$0xff] 0.0
      %68 = vst [vmem:[#allocation2 + $0x10] sm:$0xff] 0.0
      %69 = vst [vmem:[#allocation2 + $0x18] sm:$0xff] 0.0
      %70 = vst [vmem:[#allocation2 + $0x20] sm:$0xff] 0.0
      %71 = vst [vmem:[#allocation2 + $0x28] sm:$0xff] 0.0
      %72 = vst [vmem:[#allocation2 + $0x30] sm:$0xff] 0.0
      %73 = vst [vmem:[#allocation2 + $0x38] sm:$0xff] 0.0
      %74 = vst [vmem:[#allocation2 + $0x40] sm:$0xff] 0.0
      %75 = vst [vmem:[#allocation2 + $0x48] sm:$0xff] 0.0
      %76 = vst [vmem:[#allocation2 + $0x50] sm:$0xff] 0.0
      %77 = vst [vmem:[#allocation2 + $0x58] sm:$0xff] 0.0
      %78 = vst [vmem:[#allocation2 + $0x60] sm:$0xff] 0.0
      %79 = vst [vmem:[#allocation2 + $0x68] sm:$0xff] 0.0
      %80 = vst [vmem:[#allocation2 + $0x70] sm:$0xff] 0.0
      %81 = vst [vmem:[#allocation2 + $0x78] sm:$0xff] 0.0
    $region29: #{tpu_custom_call.1} parent=1 // pred_fallthru
      _
    %v82 = vld [vmem:[#allocation2] sm:$0xff]
    %v83 = vld [vmem:[#allocation2 + $0x8] sm:$0xff]
    %v84 = vld [vmem:[#allocation2 + $0x10] sm:$0xff]
    %v85 = vld [vmem:[#allocation2 + $0x18] sm:$0xff]
    %v86 = vld [vmem:[#allocation2 + $0x20] sm:$0xff]
    %v87 = vld [vmem:[#allocation2 + $0x28] sm:$0xff]
    %v88 = vld [vmem:[#allocation2 + $0x30] sm:$0xff]
    %v89 = vld [vmem:[#allocation2 + $0x38] sm:$0xff]
    %v90 = vld [vmem:[#allocation2 + $0x40] sm:$0xff]
    %v91 = vld [vmem:[#allocation2 + $0x48] sm:$0xff]
    %v92 = vld [vmem:[#allocation2 + $0x50] sm:$0xff]
    %v93 = vld [vmem:[#allocation2 + $0x58] sm:$0xff]
    %v94 = vld [vmem:[#allocation2 + $0x60] sm:$0xff]
    %v95 = vld [vmem:[#allocation2 + $0x68] sm:$0xff]
    %v96 = vld [vmem:[#allocation2 + $0x70] sm:$0xff]
    %v97 = vld [vmem:[#allocation2 + $0x78] sm:$0xff]
    %v98 = vld [vmem:[#allocation3] sm:$0xf]
    %v99 = vld [vmem:[#allocation3 + $0x4] sm:$0xf]
    %v100 = vld [vmem:[#allocation3 + $0x8] sm:$0xf]
    %v101 = vld [vmem:[#allocation3 + $0xc] sm:$0xf]
    %v102 = vld [vmem:[#allocation3 + $0x10] sm:$0xf]
    %v103 = vld [vmem:[#allocation3 + $0x14] sm:$0xf]
    %v104 = vld [vmem:[#allocation3 + $0x18] sm:$0xf]
    %v105 = vld [vmem:[#allocation3 + $0x1c] sm:$0xf]
    %v106 = vld [vmem:[#allocation3 + $0x20] sm:$0xf]
    %v107 = vld [vmem:[#allocation3 + $0x24] sm:$0xf]
    %v108 = vld [vmem:[#allocation3 + $0x28] sm:$0xf]
    %v109 = vld [vmem:[#allocation3 + $0x2c] sm:$0xf]
    %v110 = vld [vmem:[#allocation3 + $0x30] sm:$0xf]
    %v111 = vld [vmem:[#allocation3 + $0x34] sm:$0xf]
    %v112 = vld [vmem:[#allocation3 + $0x38] sm:$0xf]
    %v113 = vld [vmem:[#allocation3 + $0x3c] sm:$0xf]
    %v114 = vld [vmem:[#allocation6] sm:$0xf]
    %v115 = vld [vmem:[#allocation6 + $0x4] sm:$0xf]
    %v116 = vld [vmem:[#allocation6 + $0x8] sm:$0xf]
    %v117 = vld [vmem:[#allocation6 + $0xc] sm:$0xf]
    %v118 = vld [vmem:[#allocation6 + $0x10] sm:$0xf]
    %v119 = vld [vmem:[#allocation6 + $0x14] sm:$0xf]
    %v120 = vld [vmem:[#allocation6 + $0x18] sm:$0xf]
    %v121 = vld [vmem:[#allocation6 + $0x1c] sm:$0xf]
    %v122 = vld [vmem:[#allocation6 + $0x20] sm:$0xf]
    %v123 = vld [vmem:[#allocation6 + $0x24] sm:$0xf]
    %v124 = vld [vmem:[#allocation6 + $0x28] sm:$0xf]
    %v125 = vld [vmem:[#allocation6 + $0x2c] sm:$0xf]
    %v126 = vld [vmem:[#allocation6 + $0x30] sm:$0xf]
    %v127 = vld [vmem:[#allocation6 + $0x34] sm:$0xf]
    %v128 = vld [vmem:[#allocation6 + $0x38] sm:$0xf]
    %v129 = vld [vmem:[#allocation6 + $0x3c] sm:$0xf]
    %v146 = vunpack.c.l.b16 %v98
    %v147 = vunpack.c.l.b16 %v99
    %v148 = vunpack.c.l.b16 %v100
    %v149 = vunpack.c.l.b16 %v101
    %v150 = vunpack.c.l.b16 %v102
    %v151 = vunpack.c.l.b16 %v103
    %v152 = vunpack.c.l.b16 %v104
    %v153 = vunpack.c.l.b16 %v105
    %v154 = vunpack.c.l.b16 %v106
    %v155 = vunpack.c.l.b16 %v107
    %v156 = vunpack.c.l.b16 %v108
    %v157 = vunpack.c.l.b16 %v109
    %v158 = vunpack.c.l.b16 %v110
    %v159 = vunpack.c.l.b16 %v111
    %v160 = vunpack.c.l.b16 %v112
    %v161 = vunpack.c.l.b16 %v113
    %v162 = vpack.c.b16 %v147, %v146
    %v163 = vpack.c.b16 %v149, %v148
    %v164 = vpack.c.b16 %v151, %v150
    %v165 = vpack.c.b16 %v153, %v152
    %v166 = vpack.c.b16 %v155, %v154
    %v167 = vpack.c.b16 %v157, %v156
    %v168 = vpack.c.b16 %v159, %v158
    %v169 = vpack.c.b16 %v161, %v160
    %v194 = vunpack.c.l.b16 %v114
    %v195 = vunpack.c.l.b16 %v115
    %v196 = vunpack.c.l.b16 %v116
    %v197 = vunpack.c.l.b16 %v117
    %v198 = vunpack.c.l.b16 %v118
    %v199 = vunpack.c.l.b16 %v119
    %v200 = vunpack.c.l.b16 %v120
    %v201 = vunpack.c.l.b16 %v121
    %v202 = vunpack.c.l.b16 %v122
    %v203 = vunpack.c.l.b16 %v123
    %v204 = vunpack.c.l.b16 %v124
    %v205 = vunpack.c.l.b16 %v125
    %v206 = vunpack.c.l.b16 %v126
    %v207 = vunpack.c.l.b16 %v127
    %v208 = vunpack.c.l.b16 %v128
    %v209 = vunpack.c.l.b16 %v129
    %v210 = vpack.c.b16 %v195, %v194
    %v211 = vpack.c.b16 %v197, %v196
    %v212 = vpack.c.b16 %v199, %v198
    %v213 = vpack.c.b16 %v201, %v200
    %v214 = vpack.c.b16 %v203, %v202
    %v215 = vpack.c.b16 %v205, %v204
    %v216 = vpack.c.b16 %v207, %v206
    %v217 = vpack.c.b16 %v209, %v208
    %226 = vmatpush.bf16.msra.mxu0 %v217
    %227 = vmatpush.bf16.msra.mxu0 %v216
    %228 = vmatpush.bf16.msra.mxu0 %v215
    %229 = vmatpush.bf16.msra.mxu0 %v214
    %230 = vmatpush.bf16.msra.mxu0 %v213
    %231 = vmatpush.bf16.msra.mxu0 %v212
    %232 = vmatpush.bf16.msra.mxu0 %v211
    %233 = vmatpush.bf16.msra.mxu0 %v210
    %234 = vmatmul.bf16.gmra.mxu0 %v162
    %v235 = vpop.f32.mrf.mxu0
    %v236 = vadd.f32 0.0, %v235
    %v237 = vpop.f32.mrf.mxu0
    %v238 = vadd.f32 0.0, %v237
    %239 = vmatmul.bf16.gmra.mxu0 %v163
    %v240 = vpop.f32.mrf.mxu0
    %v241 = vadd.f32 0.0, %v240
    %v242 = vpop.f32.mrf.mxu0
    %v243 = vadd.f32 0.0, %v242
    %244 = vmatmul.bf16.gmra.mxu0 %v164
    %v245 = vpop.f32.mrf.mxu0
    %v246 = vadd.f32 0.0, %v245
    %v247 = vpop.f32.mrf.mxu0
    %v248 = vadd.f32 0.0, %v247
    %249 = vmatmul.bf16.gmra.mxu0 %v165
    %v250 = vpop.f32.mrf.mxu0
    %v251 = vadd.f32 0.0, %v250
    %v252 = vpop.f32.mrf.mxu0
    %v253 = vadd.f32 0.0, %v252
    %254 = vmatmul.bf16.gmra.mxu0 %v166
    %v255 = vpop.f32.mrf.mxu0
    %v256 = vadd.f32 0.0, %v255
    %v257 = vpop.f32.mrf.mxu0
    %v258 = vadd.f32 0.0, %v257
    %259 = vmatmul.bf16.gmra.mxu0 %v167
    %v260 = vpop.f32.mrf.mxu0
    %v261 = vadd.f32 0.0, %v260
    %v262 = vpop.f32.mrf.mxu0
    %v263 = vadd.f32 0.0, %v262
    %264 = vmatmul.bf16.gmra.mxu0 %v168
    %v265 = vpop.f32.mrf.mxu0
    %v266 = vadd.f32 0.0, %v265
    %v267 = vpop.f32.mrf.mxu0
    %v268 = vadd.f32 0.0, %v267
    %269 = vmatmul.bf16.gmra.mxu0 %v169
    %v270 = vpop.f32.mrf.mxu0
    %v271 = vadd.f32 0.0, %v270
    %v272 = vpop.f32.mrf.mxu0
    %v273 = vadd.f32 0.0, %v272
    %274 = vdwg.mxu0
    %v275 = vadd.f32 %v82, %v236
    %v276 = vadd.f32 %v83, %v238
    %v277 = vadd.f32 %v84, %v241
    %v278 = vadd.f32 %v85, %v243
    %v279 = vadd.f32 %v86, %v246
    %v280 = vadd.f32 %v87, %v248
    %v281 = vadd.f32 %v88, %v251
    %v282 = vadd.f32 %v89, %v253
    %v283 = vadd.f32 %v90, %v256
    %v284 = vadd.f32 %v91, %v258
    %v285 = vadd.f32 %v92, %v261
    %v286 = vadd.f32 %v93, %v263
    %v287 = vadd.f32 %v94, %v266
    %v288 = vadd.f32 %v95, %v268
    %v289 = vadd.f32 %v96, %v271
    %v290 = vadd.f32 %v97, %v273
    %291 = vst [vmem:[#allocation2] sm:$0xff] %v275
    %292 = vst [vmem:[#allocation2 + $0x8] sm:$0xff] %v276
    %293 = vst [vmem:[#allocation2 + $0x10] sm:$0xff] %v277
    %294 = vst [vmem:[#allocation2 + $0x18] sm:$0xff] %v278
    %295 = vst [vmem:[#allocation2 + $0x20] sm:$0xff] %v279
    %296 = vst [vmem:[#allocation2 + $0x28] sm:$0xff] %v280
    %297 = vst [vmem:[#allocation2 + $0x30] sm:$0xff] %v281
    %298 = vst [vmem:[#allocation2 + $0x38] sm:$0xff] %v282
    %299 = vst [vmem:[#allocation2 + $0x40] sm:$0xff] %v283
    %300 = vst [vmem:[#allocation2 + $0x48] sm:$0xff] %v284
    %301 = vst [vmem:[#allocation2 + $0x50] sm:$0xff] %v285
    %302 = vst [vmem:[#allocation2 + $0x58] sm:$0xff] %v286
    %303 = vst [vmem:[#allocation2 + $0x60] sm:$0xff] %v287
    %304 = vst [vmem:[#allocation2 + $0x68] sm:$0xff] %v288
    %305 = vst [vmem:[#allocation2 + $0x70] sm:$0xff] %v289
    %306 = vst [vmem:[#allocation2 + $0x78] sm:$0xff] %v290
    // Predicated region
    $region30: #{tpu_custom_call.1} parent=1 // pred_check
      %p307 = pneg %p62
    $region31: #{tpu_custom_call.1} parent=1 // pred_check_branch
      %309 = sbr.rel (%p307) target = $region33
    $region32: #{tpu_custom_call.1} parent=1 // pred_region
      %v310 = vld [vmem:[#allocation8] sm:$0xff]
      %v311 = vld [vmem:[#allocation8 + $0x8] sm:$0xff]
      %v312 = vld [vmem:[#allocation8 + $0x10] sm:$0xff]
      %v313 = vld [vmem:[#allocation8 + $0x18] sm:$0xff]
      %v314 = vld [vmem:[#allocation8 + $0x20] sm:$0xff]
      %v315 = vld [vmem:[#allocation8 + $0x28] sm:$0xff]
      %v316 = vld [vmem:[#allocation8 + $0x30] sm:$0xff]
      %v317 = vld [vmem:[#allocation8 + $0x38] sm:$0xff]
      %v318 = vld [vmem:[#allocation8 + $0x40] sm:$0xff]
      %v319 = vld [vmem:[#allocation8 + $0x48] sm:$0xff]
      %v320 = vld [vmem:[#allocation8 + $0x50] sm:$0xff]
      %v321 = vld [vmem:[#allocation8 + $0x58] sm:$0xff]
      %v322 = vld [vmem:[#allocation8 + $0x60] sm:$0xff]
      %v323 = vld [vmem:[#allocation8 + $0x68] sm:$0xff]
      %v324 = vld [vmem:[#allocation8 + $0x70] sm:$0xff]
      %v325 = vld [vmem:[#allocation8 + $0x78] sm:$0xff]
      %v326 = vld [vmem:[#allocation8 + $0x80] sm:$0x1]
      %v327 = vld [vmem:[#allocation2] sm:$0xff]
      %v328 = vld [vmem:[#allocation2 + $0x8] sm:$0xff]
      %v329 = vld [vmem:[#allocation2 + $0x10] sm:$0xff]
      %v330 = vld [vmem:[#allocation2 + $0x18] sm:$0xff]
      %v331 = vld [vmem:[#allocation2 + $0x20] sm:$0xff]
      %v332 = vld [vmem:[#allocation2 + $0x28] sm:$0xff]
      %v333 = vld [vmem:[#allocation2 + $0x30] sm:$0xff]
      %v334 = vld [vmem:[#allocation2 + $0x38] sm:$0xff]
      %v335 = vld [vmem:[#allocation2 + $0x40] sm:$0xff]
      %v336 = vld [vmem:[#allocation2 + $0x48] sm:$0xff]
      %v337 = vld [vmem:[#allocation2 + $0x50] sm:$0xff]
      %v338 = vld [vmem:[#allocation2 + $0x58] sm:$0xff]
      %v339 = vld [vmem:[#allocation2 + $0x60] sm:$0xff]
      %v340 = vld [vmem:[#allocation2 + $0x68] sm:$0xff]
      %v341 = vld [vmem:[#allocation2 + $0x70] sm:$0xff]
      %v342 = vld [vmem:[#allocation2 + $0x78] sm:$0xff]
      %v343 = vperm.slane %v326, 0
      %344 = vmatpush.msra.mxu0 %v325
      %345 = vmatpush.msra.mxu0 %v324
      %346 = vmatpush.msra.mxu0 %v323
      %347 = vmatpush.msra.mxu0 %v322
      %348 = vmatpush.msra.mxu0 %v321
      %349 = vmatpush.msra.mxu0 %v320
      %350 = vmatpush.msra.mxu0 %v319
      %351 = vmatpush.msra.mxu0 %v318
      %352 = vmatpush.msra.mxu0 %v317
      %353 = vmatpush.msra.mxu0 %v316
      %354 = vmatpush.msra.mxu0 %v315
      %355 = vmatpush.msra.mxu0 %v314
      %356 = vmatpush.msra.mxu0 %v313
      %357 = vmatpush.msra.mxu0 %v312
      %358 = vmatpush.msra.mxu0 %v311
      %359 = vmatpush.msra.mxu0 %v310
      %360 = vmatmul.f32.gmra.mxu0 %v327
      %v361 = vpop.f32.mrf.mxu0
      %v362 = vadd.f32 %v343, %v361
      %363 = vmatmul.f32.gmra.mxu0 %v328
      %v364 = vpop.f32.mrf.mxu0
      %v365 = vadd.f32 %v343, %v364
      %366 = vmatmul.f32.gmra.mxu0 %v329
      %v367 = vpop.f32.mrf.mxu0
      %v368 = vadd.f32 %v343, %v367
      %369 = vmatmul.f32.gmra.mxu0 %v330
      %v370 = vpop.f32.mrf.mxu0
      %v371 = vadd.f32 %v343, %v370
      %372 = vmatmul.f32.gmra.mxu0 %v331
      %v373 = vpop.f32.mrf.mxu0
      %v374 = vadd.f32 %v343, %v373
      %375 = vmatmul.f32.gmra.mxu0 %v332
      %v376 = vpop.f32.mrf.mxu0
      %v377 = vadd.f32 %v343, %v376
      %378 = vmatmul.f32.gmra.mxu0 %v333
      %v379 = vpop.f32.mrf.mxu0
      %v380 = vadd.f32 %v343, %v379
      %381 = vmatmul.f32.gmra.mxu0 %v334
      %v382 = vpop.f32.mrf.mxu0
      %v383 = vadd.f32 %v343, %v382
      %384 = vmatmul.f32.gmra.mxu0 %v335
      %v385 = vpop.f32.mrf.mxu0
      %v386 = vadd.f32 %v343, %v385
      %387 = vmatmul.f32.gmra.mxu0 %v336
      %v388 = vpop.f32.mrf.mxu0
      %v389 = vadd.f32 %v343, %v388
      %390 = vmatmul.f32.gmra.mxu0 %v337
      %v391 = vpop.f32.mrf.mxu0
      %v392 = vadd.f32 %v343, %v391
      %393 = vmatmul.f32.gmra.mxu0 %v338
      %v394 = vpop.f32.mrf.mxu0
      %v395 = vadd.f32 %v343, %v394
      %396 = vmatmul.f32.gmra.mxu0 %v339
      %v397 = vpop.f32.mrf.mxu0
      %v398 = vadd.f32 %v343, %v397
      %399 = vmatmul.f32.gmra.mxu0 %v340
      %v400 = vpop.f32.mrf.mxu0
      %v401 = vadd.f32 %v343, %v400
      %402 = vmatmul.f32.gmra.mxu0 %v341
      %v403 = vpop.f32.mrf.mxu0
      %v404 = vadd.f32 %v343, %v403
      %405 = vmatmul.f32.gmra.mxu0 %v342
      %v406 = vpop.f32.mrf.mxu0
      %v407 = vadd.f32 %v343, %v406
      %408 = vdwg.mxu0
      %v409 = vmax.f32 %v362, 0.0
      %v410 = vmax.f32 %v365, 0.0
      %v411 = vmax.f32 %v368, 0.0
      %v412 = vmax.f32 %v371, 0.0
      %v413 = vmax.f32 %v374, 0.0
      %v414 = vmax.f32 %v377, 0.0
      %v415 = vmax.f32 %v380, 0.0
      %v416 = vmax.f32 %v383, 0.0
      %v417 = vmax.f32 %v386, 0.0
      %v418 = vmax.f32 %v389, 0.0
      %v419 = vmax.f32 %v392, 0.0
      %v420 = vmax.f32 %v395, 0.0
      %v421 = vmax.f32 %v398, 0.0
      %v422 = vmax.f32 %v401, 0.0
      %v423 = vmax.f32 %v404, 0.0
      %v424 = vmax.f32 %v407, 0.0
      %v425 = vpack.c.bf16 %v409, %v409
      %v426 = vpack.c.bf16 %v410, %v410
      %v427 = vpack.c.bf16 %v411, %v411
      %v428 = vpack.c.bf16 %v412, %v412
      %v429 = vpack.c.bf16 %v413, %v413
      %v430 = vpack.c.bf16 %v414, %v414
      %v431 = vpack.c.bf16 %v415, %v415
      %v432 = vpack.c.bf16 %v416, %v416
      %v433 = vpack.c.bf16 %v417, %v417
      %v434 = vpack.c.bf16 %v418, %v418
      %v435 = vpack.c.bf16 %v419, %v419
      %v436 = vpack.c.bf16 %v420, %v420
      %v437 = vpack.c.bf16 %v421, %v421
      %v438 = vpack.c.bf16 %v422, %v422
      %v439 = vpack.c.bf16 %v423, %v423
      %v440 = vpack.c.bf16 %v424, %v424
      %441 = vst [vmem:[#allocation9] sm:$0xf] %v425
      %442 = vst [vmem:[#allocation9 + $0x4] sm:$0xf] %v426
      %443 = vst [vmem:[#allocation9 + $0x8] sm:$0xf] %v427
      %444 = vst [vmem:[#allocation9 + $0xc] sm:$0xf] %v428
      %445 = vst [vmem:[#allocation9 + $0x10] sm:$0xf] %v429
      %446 = vst [vmem:[#allocation9 + $0x14] sm:$0xf] %v430
      %447 = vst [vmem:[#allocation9 + $0x18] sm:$0xf] %v431
      %448 = vst [vmem:[#allocation9 + $0x1c] sm:$0xf] %v432
      %449 = vst [vmem:[#allocation9 + $0x20] sm:$0xf] %v433
      %450 = vst [vmem:[#allocation9 + $0x24] sm:$0xf] %v434
      %451 = vst [vmem:[#allocation9 + $0x28] sm:$0xf] %v435
      %452 = vst [vmem:[#allocation9 + $0x2c] sm:$0xf] %v436
      %453 = vst [vmem:[#allocation9 + $0x30] sm:$0xf] %v437
      %454 = vst [vmem:[#allocation9 + $0x34] sm:$0xf] %v438
      %455 = vst [vmem:[#allocation9 + $0x38] sm:$0xf] %v439
      %456 = vst [vmem:[#allocation9 + $0x3c] sm:$0xf] %v440
    $region33: #{tpu_custom_call.1} parent=1 // pred_fallthru
      _
    // Predicated region
    $region34: #{tpu_custom_call.1} parent=1 // pred_check
      _
    $region35: #{tpu_custom_call.1} parent=1 // pred_check_branch
      %458 = sbr.rel (0) target = $region37
    $region36: #{tpu_custom_call.1} parent=1 // pred_region
      %460 = vsyncadd [#allocation5], 0
      %s461 = sshll.u32 [#allocation9], 4
      %s462 = int_to_ptr.vmem [resolvable:$true] %s461
      %s463 = sshll.u32 %s3, 4
      %s464 = int_to_ptr.hbm [resolvable:$true] %s463
      %469 = dma.vmem_to_hbm [thread:$0]  %s462, 1024, %s464, [#allocation5], 64, 64, 4
    $region37: #{tpu_custom_call.1} parent=1 // pred_fallthru
      _
    // Predicated region
    $region38: #{tpu_custom_call.1} parent=1 // pred_check
      _
    $region39: #{tpu_custom_call.1} parent=1 // pred_check_branch
      %471 = sbr.rel (0) target = $region41
    $region40: #{tpu_custom_call.1} parent=1 // pred_region
      %473 = dma.done [#allocation5], 1024
    $region41: #{tpu_custom_call.1} parent=1 // pred_fallthru
      _
    %474 = vsyncpa [#allocation4], 1
    %475 = vsyncpa [#allocation7], 1
    %476 = vsyncpa [#allocation5], 1

</llo_original>
